<compile_context>
chip_gen: v7x
topology: tpu7x:2x2x1
jax: 0.10.0
libtpu: 0.0.40
codegen_flags: <defaults>
</compile_context>

<pallas_src>
import jax
import jax.numpy as jnp
from jax.experimental import pallas as pl
from jax.experimental.pallas import tpu as pltpu

HIDDEN = 64


def action_net_kernel(x_ref, w1t_ref, b1_ref, w2_ref, b2_ref, o_ref):
    # x_ref:   (n_actions, TB)   -- batch on the lane axis
    # w1t_ref: (64, n_actions)   -- W1 transposed
    # b1_ref:  (64, 1)           -- column bias, broadcasts across lanes
    # w2_ref:  (64, 1)           -- second-layer weight column
    # b2_ref:  (1, 1) in SMEM    -- scalar bias
    # o_ref:   (1, TB)           -- lane-dense output
    x_t = x_ref[...]
    # Layer 1 on the MXU: (64, n_actions) @ (n_actions, TB) -> (64, TB), lane-dense.
    h = jnp.dot(w1t_ref[...], x_t, preferred_element_type=jnp.float32)
    h = jnp.maximum(h + b1_ref[...], 0.0)  # ReLU on full vregs (VPU)
    # Layer 2 on VPU + sublane reduce (avoids an N=1 matmul at <1% MXU utilization).
    o = jnp.sum(h * w2_ref[...], axis=0, keepdims=True) + b2_ref[0, 0]
    o_ref[...] = o.astype(o_ref.dtype)


def _pick_tile_b(b_pad):
    """Largest lane-aligned tile (<=4096) dividing the padded batch, preferring >=2
    grid steps so v7x's two TensorCores both get work."""
    candidates = [t for t in (4096, 2048, 1024, 512, 256, 128) if b_pad % t == 0]
    for t in candidates:
        if b_pad // t >= 2:
            return t
    return candidates[0] if candidates else b_pad


def action_net_forward(x, w1, b1, w2, b2, *, tile_b=None):
    """x: [B, n_actions] f32, w1: [n_actions, 64], b1: [1, 64], w2: [64, 1], b2: [1, 1]
    -> [B, 1] f32 (same semantics as Linear->ReLU->Linear in the PyTorch module)."""
    B, n_actions = x.shape

    # Pad the batch to a lane multiple so sub-B tiling is always legal.
    B_pad = max(128, ((B + 127) // 128) * 128)
    if tile_b is None:
        tile_b = _pick_tile_b(B_pad)
    assert B_pad % tile_b == 0 and tile_b % 128 == 0
    grid = (B_pad // tile_b,)

    # Wrapper-side layout plumbing (cheap): feature-major input, batch on lanes.
    x_t = jnp.pad(x.T, ((0, 0), (0, B_pad - B)))          # (n_actions, B_pad)
    w1t = w1.T                                             # (64, n_actions)
    b1c = b1.reshape(HIDDEN, 1)                            # (64, 1)
    w2c = w2.reshape(HIDDEN, 1)                            # (64, 1)
    b2s = b2.reshape(1, 1)                                 # (1, 1) -> SMEM

    out_t = pl.pallas_call(
        action_net_kernel,
        out_shape=jax.ShapeDtypeStruct((1, B_pad), jnp.float32),
        grid_spec=pltpu.PrefetchScalarGridSpec(
            num_scalar_prefetch=0,
            grid=grid,
            in_specs=[
                pl.BlockSpec((n_actions, tile_b), lambda i: (0, i)),
                pl.BlockSpec((HIDDEN, n_actions), lambda i: (0, 0)),
                pl.BlockSpec((HIDDEN, 1), lambda i: (0, 0)),
                pl.BlockSpec((HIDDEN, 1), lambda i: (0, 0)),
                pl.BlockSpec(memory_space=pltpu.MemorySpace.SMEM),
            ],
            out_specs=pl.BlockSpec((1, tile_b), lambda i: (0, i)),
        ),
        compiler_params=pltpu.CompilerParams(
            dimension_semantics=("parallel",),
        ),
    )(x_t, w1t, b1c, w2c, b2s)

    # Drop lane padding and return batch-major [B, 1].
    return out_t[0, :B].reshape(B, 1)


def init_params(key, n_actions):
    """Mimics PyTorch nn.Linear default init: U(-1/sqrt(fan_in), 1/sqrt(fan_in))."""
    k1, k2, k3, k4 = jax.random.split(key, 4)
    bound1 = 1.0 / jnp.sqrt(n_actions)
    bound2 = 1.0 / jnp.sqrt(HIDDEN)
    w1 = jax.random.uniform(k1, (n_actions, HIDDEN), jnp.float32, -bound1, bound1)
    b1 = jax.random.uniform(k2, (1, HIDDEN), jnp.float32, -bound1, bound1)
    w2 = jax.random.uniform(k3, (HIDDEN, 1), jnp.float32, -bound2, bound2)
    b2 = jax.random.uniform(k4, (1, 1), jnp.float32, -bound2, bound2)
    return w1, b1, w2, b2


if __name__ == "__main__":
    key = jax.random.PRNGKey(0)
    k_x, k_p = jax.random.split(key)

    B = 1024        # batch of action vectors (multiple of 128 -> grid=(2,) on the lane axis)
    n_actions = 8   # small discrete action space (e.g. Pacman)

    x = jax.random.normal(k_x, (B, n_actions), jnp.float32)
    w1, b1, w2, b2 = init_params(k_p, n_actions)

    out = jax.block_until_ready(action_net_forward(x, w1, b1, w2, b2))

    # Plain-JAX reference (same math as the PyTorch Linear->ReLU->Linear).
    ref = jnp.maximum(x @ w1 + b1, 0.0) @ w2 + b2
    assert out.shape == (B, 1)
    assert jnp.allclose(out, ref, atol=1e-4, rtol=1e-4)

    print("KERNEL_OK")
</pallas_src>

<mosaic_0001>
module attributes {stable_mosaic.version = 11 : i64} {
  func.func @action_net_kernel(%arg0: i32, %arg1: memref<8x512xf32, #tpu.memory_space<vmem>>, %arg2: memref<64x8xf32, #tpu.memory_space<vmem>>, %arg3: memref<64x1xf32, #tpu.memory_space<vmem>>, %arg4: memref<64x1xf32, #tpu.memory_space<vmem>>, %arg5: memref<1x1xf32, #tpu.memory_space<smem>>, %arg6: memref<1x512xf32, #tpu.memory_space<vmem>>) attributes {dimension_semantics = [#tpu.dimension_semantics<parallel>], iteration_bounds = array<i64: 2>, scalar_prefetch = 0 : i64, scratch_operands = 0 : i64, tpu.core_type = #tpu.core_type<tc>, window_params = [{transform_indices = @transform_0, window_bounds = array<i64: 8, 512>}, {pipeline_mode = #tpu.pipeline_mode<synchronous>, transform_indices = @transform_1, window_bounds = array<i64: 64, 8>}, {pipeline_mode = #tpu.pipeline_mode<synchronous>, transform_indices = @transform_2, window_bounds = array<i64: 64, 1>}, {pipeline_mode = #tpu.pipeline_mode<synchronous>, transform_indices = @transform_3, window_bounds = array<i64: 64, 1>}, {transform_indices = @transform_4, window_bounds = array<i64: 1, 1>}, {transform_indices = @transform_5, window_bounds = array<i64: 1, 512>}]} {
    %c0 = arith.constant 0 : index
    %c0_0 = arith.constant 0 : index
    %0 = vector.load %arg1[%c0, %c0_0] : memref<8x512xf32, #tpu.memory_space<vmem>>, vector<8x512xf32>
    %c0_1 = arith.constant 0 : index
    %c0_2 = arith.constant 0 : index
    %1 = vector.load %arg2[%c0_1, %c0_2] : memref<64x8xf32, #tpu.memory_space<vmem>>, vector<64x8xf32>
    %cst = arith.constant dense<0.000000e+00> : vector<64x512xf32>
    %2 = tpu.matmul %1, %0, %cst {dimension_numbers = #tpu.dot_dimension_numbers<[1], [0], [0], [1], [0, 0, 1, 1], [], []>} : vector<64x8xf32>, vector<8x512xf32>, vector<64x512xf32> -> vector<64x512xf32>
    %c0_3 = arith.constant 0 : index
    %c0_4 = arith.constant 0 : index
    %3 = vector.load %arg3[%c0_3, %c0_4] : memref<64x1xf32, #tpu.memory_space<vmem>>, vector<64x1xf32>
    %4 = vector.broadcast %3 : vector<64x1xf32> to vector<64x512xf32>
    %5 = arith.addf %2, %4 : vector<64x512xf32>
    %cst_5 = arith.constant 0.000000e+00 : f32
    %6 = vector.broadcast %cst_5 : f32 to vector<64x512xf32>
    %7 = arith.maximumf %5, %6 : vector<64x512xf32>
    %c0_6 = arith.constant 0 : index
    %c0_7 = arith.constant 0 : index
    %8 = vector.load %arg4[%c0_6, %c0_7] : memref<64x1xf32, #tpu.memory_space<vmem>>, vector<64x1xf32>
    %9 = vector.broadcast %8 : vector<64x1xf32> to vector<64x512xf32>
    %10 = arith.mulf %7, %9 : vector<64x512xf32>
    %cst_8 = arith.constant dense<0.000000e+00> : vector<512xf32>
    %11 = vector.multi_reduction <add>, %10, %cst_8 [0] : vector<64x512xf32> to vector<512xf32>
    %12 = vector.shape_cast %11 : vector<512xf32> to vector<1x512xf32>
    %c0_9 = arith.constant 0 : index
    %c0_10 = arith.constant 0 : index
    %13 = memref.load %arg5[%c0_9, %c0_10] : memref<1x1xf32, #tpu.memory_space<smem>>
    %14 = vector.broadcast %13 : f32 to vector<1x512xf32>
    %15 = arith.addf %12, %14 : vector<1x512xf32>
    %c0_11 = arith.constant 0 : index
    %c0_12 = arith.constant 0 : index
    %16 = vector.load %arg6[%c0_11, %c0_12] : memref<1x512xf32, #tpu.memory_space<vmem>>, vector<1x512xf32>
    tpu.vector_store %arg6[%c0_11, %c0_12], %15 {strides = array<i32>} : memref<1x512xf32, #tpu.memory_space<vmem>>, vector<1x512xf32>,
    return
  }
  func.func @transform_0(%arg0: i32) -> (i32, i32) {
    %c0_i32 = arith.constant 0 : i32
    %c0_i32_0 = arith.constant 0 : i32
    return %c0_i32, %arg0 : i32, i32
  }
  func.func @transform_1(%arg0: i32) -> (i32, i32) {
    %c0_i32 = arith.constant 0 : i32
    %c0_i32_0 = arith.constant 0 : i32
    %c0_i32_1 = arith.constant 0 : i32
    return %c0_i32, %c0_i32_0 : i32, i32
  }
  func.func @transform_2(%arg0: i32) -> (i32, i32) {
    %c0_i32 = arith.constant 0 : i32
    %c0_i32_0 = arith.constant 0 : i32
    %c0_i32_1 = arith.constant 0 : i32
    return %c0_i32, %c0_i32_0 : i32, i32
  }
  func.func @transform_3(%arg0: i32) -> (i32, i32) {
    %c0_i32 = arith.constant 0 : i32
    %c0_i32_0 = arith.constant 0 : i32
    %c0_i32_1 = arith.constant 0 : i32
    return %c0_i32, %c0_i32_0 : i32, i32
  }
  func.func @transform_4(%arg0: i32) -> (i32, i32) {
    %c0_i32 = arith.constant 0 : i32
    %c0_i32_0 = arith.constant 0 : i32
    %c0_i32_1 = arith.constant 0 : i32
    return %c0_i32, %c0_i32_0 : i32, i32
  }
  func.func @transform_5(%arg0: i32) -> (i32, i32) {
    %c0_i32 = arith.constant 0 : i32
    %c0_i32_0 = arith.constant 0 : i32
    return %c0_i32, %arg0 : i32, i32
  }
}

</mosaic_0001>

<llo_original>
// kernel: tpu_custom_call.1
$region0: #{tpu_custom_call.1}
  #allocation0 [shape = 'u32[]', space=smem, size = 0x4, offset = 0x4, fixed_abs, tag = 'smem constant byte address 0x4 - core index']
  #allocation1 [shape = 'u32[144,128]{1,0:T(1,128)}', space=vmem, size = 0x12000, scoped, tag = 'internal scratch']
  #allocation2 [shape = 'f32[1,1]{1,0:T(1,128)S(6)}', space=smem, size = 0x200, scoped, tag = 'scoped memory for tpu_custom_call.1']
  %s0 = inlined_call_operand.vmem [shape: f32[8,1024], index: 0, kind: input, shape index: {}]
  %s1 = inlined_call_operand.vmem [shape: f32[64,8], index: 1, kind: input, shape index: {}]
  %s2 = inlined_call_operand.vmem [shape: f32[64,1], index: 2, kind: input, shape index: {}]
  %s3 = inlined_call_operand.vmem [shape: f32[64,1], index: 3, kind: input, shape index: {}]
  %s4 = inlined_call_operand.<no memory space> [shape: f32[1,1], index: 4, kind: input, shape index: {}]
  %s5 = inlined_call_operand.hbm [shape: f32[1,1024], index: 5, kind: output, shape index: {}]
  %s6 = sld [smem:[#allocation0]]
  $region53: #{tpu_custom_call.1} parent=0
    _
  %s8 = ssub.s32 1, %s6
  %s9 = scalar_select 0, %s8, %s6
  %10 = sst [smem:[#allocation2]] %s4
  $region1: #{tpu_custom_call.1} parent=0
    #allocation3 [shape = 'u8[4096]{0}', space=vmem, size = 0x1000, scoped, tag = 'output window, operand 0']
    #allocation4 [shape = 's32[2]{0}', space=sflag, size = 0x8, scoped, tag = 'scoped memory for tpu_custom_call.1']
    %11 = vsyncpa [#allocation4], 0
    %s12 = scalar_lea.sflag [#allocation4], 1
    %13 = vsyncpa %s12, 0
    loop: start=0, step=1, limit=4
    $region2: #{tpu_custom_call.1} parent=1 // loop_pre_header
      _
    $region3: #{tpu_custom_call.1} parent=1 // loop_header
      %s15 = sphi 0, %s19
      %p16 = scmp.ge.s32.totalorder %s15, 4
      %s25 = sphi 0, %s27
      %s28 = sphi 0, %s25
      %s29 = sphi 0, %s28
      %s45 = sphi 0, %s29
      %s49 = sphi 0, %s49
      %s51 = sphi 0, %s49
      %s52 = sphi 0, %s51
      %s66 = sphi 0, %s52
      %s70 = sphi 0, %s70
      %s72 = sphi 0, %s70
      %s73 = sphi 0, %s72
      %s87 = sphi 0, %s73
      %s91 = sphi 0, %s91
      %s93 = sphi 0, %s91
      %s94 = sphi 0, %s93
      %s108 = sphi 0, %s94
      %s112 = sphi 0, %s112
      %s114 = sphi 0, %s112
      %s115 = sphi 0, %s114
      %s129 = sphi 0, %s115
      %s135 = sphi 0, %s137
      %s138 = sphi 0, %s135
      %s139 = sphi 0, %s138
      %s155 = sphi 0, %s139
    $region4: #{tpu_custom_call.1} parent=1 // loop_header_branch
      %18 = sbr.rel (%p16) target = $region8
    $region5: #{tpu_custom_call.1} parent=1 // loop_body
      %s20 = ssub.s32 %s15, 1
      %s21 = ssub.s32 %s15, 2
      %s22 = sadd.s32 %s15, 1
      %s23 = ssub.s32 %s15, %s22
      %p24 = scmp.eq.s32.totalorder %s23, 0
      %s26 = sadd.s32 %s25, 1
      %s27 = scalar_select %p24, %s25, %s26
      %p30 = pneg %p24
      %p31 = scmp.eq.s32.totalorder %s15, 1
      %p32 = por %p30, %p31
      %p33 = scmp.ne.s32.totalorder %s25, %s28
      %p34 = scmp.eq.s32.totalorder %s15, 0
      %p35 = por %p33, %p34
      %p36 = scmp.ne.s32.totalorder %s25, %s28
      %p37 = scmp.eq.s32.totalorder %s20, 1
      %p38 = por %p36, %p37
      %p39 = scmp.ne.s32.totalorder %s28, %s29
      %p40 = scmp.eq.s32.totalorder %s20, 0
      %p41 = por %p39, %p40
      %p42 = scmp.ne.s32.totalorder %s28, %s29
      %p43 = scmp.eq.s32.totalorder %s21, 1
      %p44 = por %p42, %p43
      %p46 = scmp.ne.s32.totalorder %s29, %s45
      %p47 = scmp.eq.s32.totalorder %s21, 0
      %p48 = por %p46, %p47
      %s50 = sadd.s32 %s49, 1
      %p53 = scmp.eq.s32.totalorder %s15, 1
      %p54 = scmp.ne.s32.totalorder %s49, %s51
      %p55 = scmp.eq.s32.totalorder %s15, 0
      %p56 = por %p54, %p55
      %p57 = scmp.ne.s32.totalorder %s49, %s51
      %p58 = scmp.eq.s32.totalorder %s20, 1
      %p59 = por %p57, %p58
      %p60 = scmp.ne.s32.totalorder %s51, %s52
      %p61 = scmp.eq.s32.totalorder %s20, 0
      %p62 = por %p60, %p61
      %p63 = scmp.ne.s32.totalorder %s51, %s52
      %p64 = scmp.eq.s32.totalorder %s21, 1
      %p65 = por %p63, %p64
      %p67 = scmp.ne.s32.totalorder %s52, %s66
      %p68 = scmp.eq.s32.totalorder %s21, 0
      %p69 = por %p67, %p68
      %s71 = sadd.s32 %s70, 1
      %p74 = scmp.eq.s32.totalorder %s15, 1
      %p75 = scmp.ne.s32.totalorder %s70, %s72
      %p76 = scmp.eq.s32.totalorder %s15, 0
      %p77 = por %p75, %p76
      %p78 = scmp.ne.s32.totalorder %s70, %s72
      %p79 = scmp.eq.s32.totalorder %s20, 1
      %p80 = por %p78, %p79
      %p81 = scmp.ne.s32.totalorder %s72, %s73
      %p82 = scmp.eq.s32.totalorder %s20, 0
      %p83 = por %p81, %p82
      %p84 = scmp.ne.s32.totalorder %s72, %s73
      %p85 = scmp.eq.s32.totalorder %s21, 1
      %p86 = por %p84, %p85
      %p88 = scmp.ne.s32.totalorder %s73, %s87
      %p89 = scmp.eq.s32.totalorder %s21, 0
      %p90 = por %p88, %p89
      %s92 = sadd.s32 %s91, 1
      %p95 = scmp.eq.s32.totalorder %s15, 1
      %p96 = scmp.ne.s32.totalorder %s91, %s93
      %p97 = scmp.eq.s32.totalorder %s15, 0
      %p98 = por %p96, %p97
      %p99 = scmp.ne.s32.totalorder %s91, %s93
      %p100 = scmp.eq.s32.totalorder %s20, 1
      %p101 = por %p99, %p100
      %p102 = scmp.ne.s32.totalorder %s93, %s94
      %p103 = scmp.eq.s32.totalorder %s20, 0
      %p104 = por %p102, %p103
      %p105 = scmp.ne.s32.totalorder %s93, %s94
      %p106 = scmp.eq.s32.totalorder %s21, 1
      %p107 = por %p105, %p106
      %p109 = scmp.ne.s32.totalorder %s94, %s108
      %p110 = scmp.eq.s32.totalorder %s21, 0
      %p111 = por %p109, %p110
      %s113 = sadd.s32 %s112, 1
      %p116 = scmp.eq.s32.totalorder %s15, 1
      %p117 = scmp.ne.s32.totalorder %s112, %s114
      %p118 = scmp.eq.s32.totalorder %s15, 0
      %p119 = por %p117, %p118
      %p120 = scmp.ne.s32.totalorder %s112, %s114
      %p121 = scmp.eq.s32.totalorder %s20, 1
      %p122 = por %p120, %p121
      %p123 = scmp.ne.s32.totalorder %s114, %s115
      %p124 = scmp.eq.s32.totalorder %s20, 0
      %p125 = por %p123, %p124
      %p126 = scmp.ne.s32.totalorder %s114, %s115
      %p127 = scmp.eq.s32.totalorder %s21, 1
      %p128 = por %p126, %p127
      %p130 = scmp.ne.s32.totalorder %s115, %s129
      %p131 = scmp.eq.s32.totalorder %s21, 0
      %p132 = por %p130, %p131
      %s133 = ssub.s32 %s15, %s22
      %p134 = scmp.eq.s32.totalorder %s133, 0
      %s136 = sadd.s32 %s135, 1
      %s137 = scalar_select %p134, %s135, %s136
      %p140 = pneg %p134
      %p141 = scmp.eq.s32.totalorder %s15, 1
      %p142 = por %p140, %p141
      %p143 = scmp.ne.s32.totalorder %s135, %s138
      %p144 = scmp.eq.s32.totalorder %s15, 0
      %p145 = por %p143, %p144
      %p146 = scmp.ne.s32.totalorder %s135, %s138
      %p147 = scmp.eq.s32.totalorder %s20, 1
      %p148 = por %p146, %p147
      %p149 = scmp.ne.s32.totalorder %s138, %s139
      %p150 = scmp.eq.s32.totalorder %s20, 0
      %p151 = por %p149, %p150
      %p152 = scmp.ne.s32.totalorder %s138, %s139
      %p153 = scmp.eq.s32.totalorder %s21, 1
      %p154 = por %p152, %p153
      %p156 = scmp.ne.s32.totalorder %s139, %s155
      %p157 = scmp.eq.s32.totalorder %s21, 0
      %p158 = por %p156, %p157
      %p159 = scmp.le.s32.totalorder 1, %s15
      %p160 = scmp.lt.s32.totalorder %s15, 3
      %p161 = pnand %p159, %p160
      %p162 = pneg %p161
      // Predicated region
      $region9: #{tpu_custom_call.1} parent=5 // pred_check
        _
      $region10: #{tpu_custom_call.1} parent=5 // pred_check_branch
        %164 = sbr.rel (%p161) target = $region12
      $region11: #{tpu_custom_call.1} parent=5 // pred_region
        %s165 = ssub.s32 %s15, 1
        // Predicated region
        $region13: #{tpu_custom_call.1} parent=11 // pred_check
          %p166 = pneg %p62
        $region14: #{tpu_custom_call.1} parent=11 // pred_check_branch
          %168 = sbr.rel (%p166) target = $region16
        $region15: #{tpu_custom_call.1} parent=11 // pred_region
          _
        $region16: #{tpu_custom_call.1} parent=11 // pred_fallthru
          _
        // Predicated region
        $region17: #{tpu_custom_call.1} parent=11 // pred_check
          %p169 = pneg %p83
        $region18: #{tpu_custom_call.1} parent=11 // pred_check_branch
          %171 = sbr.rel (%p169) target = $region20
        $region19: #{tpu_custom_call.1} parent=11 // pred_region
          _
        $region20: #{tpu_custom_call.1} parent=11 // pred_fallthru
          _
        // Predicated region
        $region21: #{tpu_custom_call.1} parent=11 // pred_check
          %p172 = pneg %p104
        $region22: #{tpu_custom_call.1} parent=11 // pred_check_branch
          %174 = sbr.rel (%p172) target = $region24
        $region23: #{tpu_custom_call.1} parent=11 // pred_region
          _
        $region24: #{tpu_custom_call.1} parent=11 // pred_fallthru
          _
        // Predicated region
        $region25: #{tpu_custom_call.1} parent=11 // pred_check
          %p175 = pneg %p125
        $region26: #{tpu_custom_call.1} parent=11 // pred_check_branch
          %177 = sbr.rel (%p175) target = $region28
        $region27: #{tpu_custom_call.1} parent=11 // pred_region
          _
        $region28: #{tpu_custom_call.1} parent=11 // pred_fallthru
          _
      $region12: #{tpu_custom_call.1} parent=5 // pred_fallthru
        _
      %p178 = scmp.lt.s32.totalorder %s15, 2
      // Predicated region
      $region29: #{tpu_custom_call.1} parent=5 // pred_check
        %p179 = pneg %p178
      $region30: #{tpu_custom_call.1} parent=5 // pred_check_branch
        %181 = sbr.rel (%p179) target = $region32
      $region31: #{tpu_custom_call.1} parent=5 // pred_region
        // Predicated region
        $region33: #{tpu_custom_call.1} parent=31 // pred_check
          %p182 = pneg %p35
        $region34: #{tpu_custom_call.1} parent=31 // pred_check_branch
          %184 = sbr.rel (%p182) target = $region36
        $region35: #{tpu_custom_call.1} parent=31 // pred_region
          %s185 = smul.u32 4, %s15
          %p186 = scmp.lt.s32.totalorder %s185, 7
          %s187 = scalar_select %p186, %s185, 7
          %s188 = smul.addr %s187, 8
          %s189 = scalar_lea.vmem %s0, %s188
          %s190 = smul.u32 4, %s15
        $region36: #{tpu_custom_call.1} parent=31 // pred_fallthru
          _
      $region32: #{tpu_custom_call.1} parent=5 // pred_fallthru
        _
      %p191 = scmp.le.s32.totalorder 1, %s15
      %p192 = scmp.lt.s32.totalorder %s15, 3
      %p193 = pnand %p191, %p192
      %p194 = pneg %p193
      // Predicated region
      $region37: #{tpu_custom_call.1} parent=5 // pred_check
        _
      $region38: #{tpu_custom_call.1} parent=5 // pred_check_branch
        %196 = sbr.rel (%p193) target = $region40
      $region39: #{tpu_custom_call.1} parent=5 // pred_region
        %s197 = ssub.s32 %s15, 1
        %s198 = smul.u32 4, %s20
        %p199 = scmp.lt.s32.totalorder %s198, 7
        %s200 = scalar_select %p199, %s198, 7
        %s201 = smul.addr %s200, 8
        %s202 = scalar_lea.vmem %s0, %s201
        %p203 = pneg %p41
        %p204 = pneg %p38
        %p205 = pneg %p62
        %p206 = pneg %p59
        %p207 = pneg %p83
        %p208 = pneg %p80
        %p209 = pneg %p104
        %p210 = pneg %p101
        %p211 = pneg %p125
        %p212 = pneg %p122
        %p213 = pneg %p151
        %p214 = pneg %p148
        %s215 = sand.u32 %s138, 1
        %s216 = scalar_lea.sflag [#allocation4], %s215
        %s217 = sand.u32 %s138, 1
        %s218 = smul.addr %s217, 4
        %s219 = scalar_lea.vmem [#allocation3], %s218
        %s220 = smul.u32 4, %s20
        %p221 = scmp.lt.s32.totalorder %s220, 7
        %s222 = scalar_select %p221, %s220, 7
        %s223 = smul.addr %s222, 8
        %s224 = scalar_lea.vmem %s0, %s223
        %s225 = smul.u32 4, %s20
        %s226 = smul.u32 4, %s20
        %v227 = vld [vmem:[%s224] sm:$0xff]
        %v228 = vld [vmem:[%s224 + $0x8] sm:$0xff]
        %v229 = vld [vmem:[%s224 + $0x10] sm:$0xff]
        %v230 = vld [vmem:[%s224 + $0x18] sm:$0xff]
        %v231 = vld [vmem:[%s1] sm:$0xff]
        %v232 = vld [vmem:[%s1 + $0x8] sm:$0xff]
        %v233 = vld [vmem:[%s1 + $0x10] sm:$0xff]
        %v234 = vld [vmem:[%s1 + $0x18] sm:$0xff]
        %v235 = vld [vmem:[%s1 + $0x20] sm:$0xff]
        %v236 = vld [vmem:[%s1 + $0x28] sm:$0xff]
        %v237 = vld [vmem:[%s1 + $0x30] sm:$0xff]
        %v238 = vld [vmem:[%s1 + $0x38] sm:$0xff]
        %v239 = vld [vmem:[%s2] sm:$0xff]
        %v240 = vld [vmem:[%s2 + $0x8] sm:$0xff]
        %v241 = vld [vmem:[%s2 + $0x10] sm:$0xff]
        %v242 = vld [vmem:[%s2 + $0x18] sm:$0xff]
        %v243 = vld [vmem:[%s2 + $0x20] sm:$0xff]
        %v244 = vld [vmem:[%s2 + $0x28] sm:$0xff]
        %v245 = vld [vmem:[%s2 + $0x30] sm:$0xff]
        %v246 = vld [vmem:[%s2 + $0x38] sm:$0xff]
        %248 = vset.pattern.permute.xlu0 0
        %249 = vperm.xlu0 %248, %v239
        %v250 = vpop.permute.xlu0 %249
        %253 = vset.pattern.permute.xlu0 0
        %254 = vperm.xlu0 %253, %v240
        %v255 = vpop.permute.xlu0 %254
        %258 = vset.pattern.permute.xlu0 0
        %259 = vperm.xlu0 %258, %v241
        %v260 = vpop.permute.xlu0 %259
        %263 = vset.pattern.permute.xlu0 0
        %264 = vperm.xlu0 %263, %v242
        %v265 = vpop.permute.xlu0 %264
        %268 = vset.pattern.permute.xlu0 0
        %269 = vperm.xlu0 %268, %v243
        %v270 = vpop.permute.xlu0 %269
        %273 = vset.pattern.permute.xlu0 0
        %274 = vperm.xlu0 %273, %v244
        %v275 = vpop.permute.xlu0 %274
        %278 = vset.pattern.permute.xlu0 0
        %279 = vperm.xlu0 %278, %v245
        %v280 = vpop.permute.xlu0 %279
        %283 = vset.pattern.permute.xlu0 0
        %284 = vperm.xlu0 %283, %v246
        %v285 = vpop.permute.xlu0 %284
        %vm287 = vcmask 64512
        %v289 = vsel %vm287, %v231, 0
        %v292 = vsel %vm287, %v232, 0
        %v295 = vsel %vm287, %v233, 0
        %v298 = vsel %vm287, %v234, 0
        %v301 = vsel %vm287, %v235, 0
        %v304 = vsel %vm287, %v236, 0
        %v307 = vsel %vm287, %v237, 0
        %v310 = vsel %vm287, %v238, 0
        %312 = vmatprep.subr.mxu0 %v228
        %313 = vmatpush1.msra.mxu0 %v227
        %314 = vmatprep.subr.mxu0 0.0
        %315 = vmatpush1.msra.mxu0 0.0
        %316 = vmatprep.subr.mxu0 0.0
        %317 = vmatpush1.msra.mxu0 0.0
        %318 = vmatprep.subr.mxu0 0.0
        %319 = vmatpush1.msra.mxu0 0.0
        %320 = vmatprep.subr.mxu0 0.0
        %321 = vmatpush1.msra.mxu0 0.0
        %322 = vmatprep.subr.mxu0 0.0
        %323 = vmatpush1.msra.mxu0 0.0
        %324 = vmatprep.subr.mxu0 0.0
        %325 = vmatpush1.msra.mxu0 0.0
        %326 = vmatprep.subr.mxu0 0.0
        %327 = vmatpush1.msra.mxu0 0.0
        %328 = vmatprep.subr.mxu0 0.0
        %329 = vmatpush1.msra.mxu0 0.0
        %330 = vmatprep.subr.mxu0 0.0
        %331 = vmatpush1.msra.mxu0 0.0
        %332 = vmatprep.subr.mxu0 0.0
        %333 = vmatpush1.msra.mxu0 0.0
        %334 = vmatprep.subr.mxu0 0.0
        %335 = vmatpush1.msra.mxu0 0.0
        %336 = vmatprep.subr.mxu0 0.0
        %337 = vmatpush1.msra.mxu0 0.0
        %338 = vmatprep.subr.mxu0 0.0
        %339 = vmatpush1.msra.mxu0 0.0
        %340 = vmatprep.subr.mxu0 0.0
        %341 = vmatpush1.msra.mxu0 0.0
        %342 = vmatprep.subr.mxu0 0.0
        %343 = vmatpush1.msra.mxu0 0.0
        %344 = vmatprep.subr.mxu0 0.0
        %345 = vmatpush1.msra.mxu0 0.0
        %346 = vmatprep.subr.mxu0 0.0
        %347 = vmatpush1.msra.mxu0 0.0
        %348 = vmatprep.subr.mxu0 0.0
        %349 = vmatpush1.msra.mxu0 0.0
        %350 = vmatprep.subr.mxu0 0.0
        %351 = vmatpush1.msra.mxu0 0.0
        %352 = vmatprep.subr.mxu0 0.0
        %353 = vmatpush1.msra.mxu0 0.0
        %354 = vmatprep.subr.mxu0 0.0
        %355 = vmatpush1.msra.mxu0 0.0
        %356 = vmatprep.subr.mxu0 0.0
        %357 = vmatpush1.msra.mxu0 0.0
        %358 = vmatprep.subr.mxu0 0.0
        %359 = vmatpush1.msra.mxu0 0.0
        %360 = vmatprep.subr.mxu0 0.0
        %361 = vmatpush1.msra.mxu0 0.0
        %362 = vmatprep.subr.mxu0 0.0
        %363 = vmatpush1.msra.mxu0 0.0
        %364 = vmatprep.subr.mxu0 0.0
        %365 = vmatpush1.msra.mxu0 0.0
        %366 = vmatprep.subr.mxu0 0.0
        %367 = vmatpush1.msra.mxu0 0.0
        %368 = vmatprep.subr.mxu0 0.0
        %369 = vmatpush1.msra.mxu0 0.0
        %370 = vmatprep.subr.mxu0 0.0
        %371 = vmatpush1.msra.mxu0 0.0
        %372 = vmatprep.subr.mxu0 0.0
        %373 = vmatpush1.msra.mxu0 0.0
        %374 = vmatprep.subr.mxu0 0.0
        %375 = vmatpush1.msra.mxu0 0.0
        %376 = vmatprep.mubr.f32.mxu0 0.0
        %377 = vmatmul.mubr.f32.gmra.mrb[0].mxu0 %v289
        %v378 = vpop.f32.mrb[0].mxu0
        %v379 = vadd.f32 %v250, %v378
        %v380 = vpop.f32.mrb[0].mxu0
        %v381 = vadd.f32 %v250, %v380
        %382 = vmatprep.mubr.f32.mxu0 0.0
        %383 = vmatmul.mubr.f32.gmra.mrb[0].mxu0 %v292
        %v384 = vpop.f32.mrb[0].mxu0
        %v385 = vadd.f32 %v255, %v384
        %v386 = vpop.f32.mrb[0].mxu0
        %v387 = vadd.f32 %v255, %v386
        %388 = vmatprep.mubr.f32.mxu0 0.0
        %389 = vmatmul.mubr.f32.gmra.mrb[0].mxu0 %v295
        %v390 = vpop.f32.mrb[0].mxu0
        %v391 = vadd.f32 %v260, %v390
        %v392 = vpop.f32.mrb[0].mxu0
        %v393 = vadd.f32 %v260, %v392
        %394 = vmatprep.mubr.f32.mxu0 0.0
        %395 = vmatmul.mubr.f32.gmra.mrb[0].mxu0 %v298
        %v396 = vpop.f32.mrb[0].mxu0
        %v397 = vadd.f32 %v265, %v396
        %v398 = vpop.f32.mrb[0].mxu0
        %v399 = vadd.f32 %v265, %v398
        %400 = vmatprep.mubr.f32.mxu0 0.0
        %401 = vmatmul.mubr.f32.gmra.mrb[0].mxu0 %v301
        %v402 = vpop.f32.mrb[0].mxu0
        %v403 = vadd.f32 %v270, %v402
        %v404 = vpop.f32.mrb[0].mxu0
        %v405 = vadd.f32 %v270, %v404
        %406 = vmatprep.mubr.f32.mxu0 0.0
        %407 = vmatmul.mubr.f32.gmra.mrb[0].mxu0 %v304
        %v408 = vpop.f32.mrb[0].mxu0
        %v409 = vadd.f32 %v275, %v408
        %v410 = vpop.f32.mrb[0].mxu0
        %v411 = vadd.f32 %v275, %v410
        %412 = vmatprep.mubr.f32.mxu0 0.0
        %413 = vmatmul.mubr.f32.gmra.mrb[0].mxu0 %v307
        %v414 = vpop.f32.mrb[0].mxu0
        %v415 = vadd.f32 %v280, %v414
        %v416 = vpop.f32.mrb[0].mxu0
        %v417 = vadd.f32 %v280, %v416
        %418 = vmatprep.mubr.f32.mxu0 0.0
        %419 = vmatmul.mubr.f32.gmra.mrb[0].mxu0 %v310
        %v420 = vpop.f32.mrb[0].mxu0
        %v421 = vadd.f32 %v285, %v420
        %v422 = vpop.f32.mrb[0].mxu0
        %v423 = vadd.f32 %v285, %v422
        %424 = vdwg.mxu0
        %425 = vmatprep.subr.mxu0 %v230
        %426 = vmatpush1.msra.mxu0 %v229
        %427 = vmatprep.subr.mxu0 0.0
        %428 = vmatpush1.msra.mxu0 0.0
        %429 = vmatprep.subr.mxu0 0.0
        %430 = vmatpush1.msra.mxu0 0.0
        %431 = vmatprep.subr.mxu0 0.0
        %432 = vmatpush1.msra.mxu0 0.0
        %433 = vmatprep.subr.mxu0 0.0
        %434 = vmatpush1.msra.mxu0 0.0
        %435 = vmatprep.subr.mxu0 0.0
        %436 = vmatpush1.msra.mxu0 0.0
        %437 = vmatprep.subr.mxu0 0.0
        %438 = vmatpush1.msra.mxu0 0.0
        %439 = vmatprep.subr.mxu0 0.0
        %440 = vmatpush1.msra.mxu0 0.0
        %441 = vmatprep.subr.mxu0 0.0
        %442 = vmatpush1.msra.mxu0 0.0
        %443 = vmatprep.subr.mxu0 0.0
        %444 = vmatpush1.msra.mxu0 0.0
        %445 = vmatprep.subr.mxu0 0.0
        %446 = vmatpush1.msra.mxu0 0.0
        %447 = vmatprep.subr.mxu0 0.0
        %448 = vmatpush1.msra.mxu0 0.0
        %449 = vmatprep.subr.mxu0 0.0
        %450 = vmatpush1.msra.mxu0 0.0
        %451 = vmatprep.subr.mxu0 0.0
        %452 = vmatpush1.msra.mxu0 0.0
        %453 = vmatprep.subr.mxu0 0.0
        %454 = vmatpush1.msra.mxu0 0.0
        %455 = vmatprep.subr.mxu0 0.0
        %456 = vmatpush1.msra.mxu0 0.0
        %457 = vmatprep.subr.mxu0 0.0
        %458 = vmatpush1.msra.mxu0 0.0
        %459 = vmatprep.subr.mxu0 0.0
        %460 = vmatpush1.msra.mxu0 0.0
        %461 = vmatprep.subr.mxu0 0.0
        %462 = vmatpush1.msra.mxu0 0.0
        %463 = vmatprep.subr.mxu0 0.0
        %464 = vmatpush1.msra.mxu0 0.0
        %465 = vmatprep.subr.mxu0 0.0
        %466 = vmatpush1.msra.mxu0 0.0
        %467 = vmatprep.subr.mxu0 0.0
        %468 = vmatpush1.msra.mxu0 0.0
        %469 = vmatprep.subr.mxu0 0.0
        %470 = vmatpush1.msra.mxu0 0.0
        %471 = vmatprep.subr.mxu0 0.0
        %472 = vmatpush1.msra.mxu0 0.0
        %473 = vmatprep.subr.mxu0 0.0
        %474 = vmatpush1.msra.mxu0 0.0
        %475 = vmatprep.subr.mxu0 0.0
        %476 = vmatpush1.msra.mxu0 0.0
        %477 = vmatprep.subr.mxu0 0.0
        %478 = vmatpush1.msra.mxu0 0.0
        %479 = vmatprep.subr.mxu0 0.0
        %480 = vmatpush1.msra.mxu0 0.0
        %481 = vmatprep.subr.mxu0 0.0
        %482 = vmatpush1.msra.mxu0 0.0
        %483 = vmatprep.subr.mxu0 0.0
        %484 = vmatpush1.msra.mxu0 0.0
        %485 = vmatprep.subr.mxu0 0.0
        %486 = vmatpush1.msra.mxu0 0.0
        %487 = vmatprep.subr.mxu0 0.0
        %488 = vmatpush1.msra.mxu0 0.0
        %489 = vmatprep.mubr.f32.mxu0 0.0
        %490 = vmatmul.mubr.f32.gmra.mrb[0].mxu0 %v289
        %v491 = vpop.f32.mrb[0].mxu0
        %v492 = vadd.f32 %v250, %v491
        %v493 = vpop.f32.mrb[0].mxu0
        %v494 = vadd.f32 %v250, %v493
        %495 = vmatprep.mubr.f32.mxu0 0.0
        %496 = vmatmul.mubr.f32.gmra.mrb[0].mxu0 %v292
        %v497 = vpop.f32.mrb[0].mxu0
        %v498 = vadd.f32 %v255, %v497
        %v499 = vpop.f32.mrb[0].mxu0
        %v500 = vadd.f32 %v255, %v499
        %501 = vmatprep.mubr.f32.mxu0 0.0
        %502 = vmatmul.mubr.f32.gmra.mrb[0].mxu0 %v295
        %v503 = vpop.f32.mrb[0].mxu0
        %v504 = vadd.f32 %v260, %v503
        %v505 = vpop.f32.mrb[0].mxu0
        %v506 = vadd.f32 %v260, %v505
        %507 = vmatprep.mubr.f32.mxu0 0.0
        %508 = vmatmul.mubr.f32.gmra.mrb[0].mxu0 %v298
        %v509 = vpop.f32.mrb[0].mxu0
        %v510 = vadd.f32 %v265, %v509
        %v511 = vpop.f32.mrb[0].mxu0
        %v512 = vadd.f32 %v265, %v511
        %513 = vmatprep.mubr.f32.mxu0 0.0
        %514 = vmatmul.mubr.f32.gmra.mrb[0].mxu0 %v301
        %v515 = vpop.f32.mrb[0].mxu0
        %v516 = vadd.f32 %v270, %v515
        %v517 = vpop.f32.mrb[0].mxu0
        %v518 = vadd.f32 %v270, %v517
        %519 = vmatprep.mubr.f32.mxu0 0.0
        %520 = vmatmul.mubr.f32.gmra.mrb[0].mxu0 %v304
        %v521 = vpop.f32.mrb[0].mxu0
        %v522 = vadd.f32 %v275, %v521
        %v523 = vpop.f32.mrb[0].mxu0
        %v524 = vadd.f32 %v275, %v523
        %525 = vmatprep.mubr.f32.mxu0 0.0
        %526 = vmatmul.mubr.f32.gmra.mrb[0].mxu0 %v307
        %v527 = vpop.f32.mrb[0].mxu0
        %v528 = vadd.f32 %v280, %v527
        %v529 = vpop.f32.mrb[0].mxu0
        %v530 = vadd.f32 %v280, %v529
        %531 = vmatprep.mubr.f32.mxu0 0.0
        %532 = vmatmul.mubr.f32.gmra.mrb[0].mxu0 %v310
        %v533 = vpop.f32.mrb[0].mxu0
        %v534 = vadd.f32 %v285, %v533
        %v535 = vpop.f32.mrb[0].mxu0
        %v536 = vadd.f32 %v285, %v535
        %537 = vdwg.mxu0
        %v538 = vmax.f32 %v379, 0.0
        %v539 = vmax.f32 %v381, 0.0
        %v540 = vmax.f32 %v492, 0.0
        %v541 = vmax.f32 %v494, 0.0
        %v542 = vmax.f32 %v385, 0.0
        %v543 = vmax.f32 %v387, 0.0
        %v544 = vmax.f32 %v498, 0.0
        %v545 = vmax.f32 %v500, 0.0
        %v546 = vmax.f32 %v391, 0.0
        %v547 = vmax.f32 %v393, 0.0
        %v548 = vmax.f32 %v504, 0.0
        %v549 = vmax.f32 %v506, 0.0
        %v550 = vmax.f32 %v397, 0.0
        %v551 = vmax.f32 %v399, 0.0
        %v552 = vmax.f32 %v510, 0.0
        %v553 = vmax.f32 %v512, 0.0
        %v554 = vmax.f32 %v403, 0.0
        %v555 = vmax.f32 %v405, 0.0
        %v556 = vmax.f32 %v516, 0.0
        %v557 = vmax.f32 %v518, 0.0
        %v558 = vmax.f32 %v409, 0.0
        %v559 = vmax.f32 %v411, 0.0
        %v560 = vmax.f32 %v522, 0.0
        %v561 = vmax.f32 %v524, 0.0
        %v562 = vmax.f32 %v415, 0.0
        %v563 = vmax.f32 %v417, 0.0
        %v564 = vmax.f32 %v528, 0.0
        %v565 = vmax.f32 %v530, 0.0
        %v566 = vmax.f32 %v421, 0.0
        %v567 = vmax.f32 %v423, 0.0
        %v568 = vmax.f32 %v534, 0.0
        %v569 = vmax.f32 %v536, 0.0
        %v570 = vld [vmem:[%s3] sm:$0xff]
        %v571 = vld [vmem:[%s3 + $0x8] sm:$0xff]
        %v572 = vld [vmem:[%s3 + $0x10] sm:$0xff]
        %v573 = vld [vmem:[%s3 + $0x18] sm:$0xff]
        %v574 = vld [vmem:[%s3 + $0x20] sm:$0xff]
        %v575 = vld [vmem:[%s3 + $0x28] sm:$0xff]
        %v576 = vld [vmem:[%s3 + $0x30] sm:$0xff]
        %v577 = vld [vmem:[%s3 + $0x38] sm:$0xff]
        %579 = vset.pattern.permute.xlu0 0
        %580 = vperm.xlu0 %579, %v570
        %v581 = vpop.permute.xlu0 %580
        %584 = vset.pattern.permute.xlu0 0
        %585 = vperm.xlu0 %584, %v571
        %v586 = vpop.permute.xlu0 %585
        %589 = vset.pattern.permute.xlu0 0
        %590 = vperm.xlu0 %589, %v572
        %v591 = vpop.permute.xlu0 %590
        %594 = vset.pattern.permute.xlu0 0
        %595 = vperm.xlu0 %594, %v573
        %v596 = vpop.permute.xlu0 %595
        %599 = vset.pattern.permute.xlu0 0
        %600 = vperm.xlu0 %599, %v574
        %v601 = vpop.permute.xlu0 %600
        %604 = vset.pattern.permute.xlu0 0
        %605 = vperm.xlu0 %604, %v575
        %v606 = vpop.permute.xlu0 %605
        %609 = vset.pattern.permute.xlu0 0
        %610 = vperm.xlu0 %609, %v576
        %v611 = vpop.permute.xlu0 %610
        %614 = vset.pattern.permute.xlu0 0
        %615 = vperm.xlu0 %614, %v577
        %v616 = vpop.permute.xlu0 %615
        %v618 = vmul.f32 %v538, %v581
        %v619 = vmul.f32 %v539, %v581
        %v620 = vmul.f32 %v540, %v581
        %v621 = vmul.f32 %v541, %v581
        %v622 = vmul.f32 %v542, %v586
        %v623 = vmul.f32 %v543, %v586
        %v624 = vmul.f32 %v544, %v586
        %v625 = vmul.f32 %v545, %v586
        %v626 = vmul.f32 %v546, %v591
        %v627 = vmul.f32 %v547, %v591
        %v628 = vmul.f32 %v548, %v591
        %v629 = vmul.f32 %v549, %v591
        %v630 = vmul.f32 %v550, %v596
        %v631 = vmul.f32 %v551, %v596
        %v632 = vmul.f32 %v552, %v596
        %v633 = vmul.f32 %v553, %v596
        %v634 = vmul.f32 %v554, %v601
        %v635 = vmul.f32 %v555, %v601
        %v636 = vmul.f32 %v556, %v601
        %v637 = vmul.f32 %v557, %v601
        %v638 = vmul.f32 %v558, %v606
        %v639 = vmul.f32 %v559, %v606
        %v640 = vmul.f32 %v560, %v606
        %v641 = vmul.f32 %v561, %v606
        %v642 = vmul.f32 %v562, %v611
        %v643 = vmul.f32 %v563, %v611
        %v644 = vmul.f32 %v564, %v611
        %v645 = vmul.f32 %v565, %v611
        %v646 = vmul.f32 %v566, %v616
        %v647 = vmul.f32 %v567, %v616
        %v648 = vmul.f32 %v568, %v616
        %v649 = vmul.f32 %v569, %v616
        %v650 = vadd.f32 %v618, %v622
        %v651 = vadd.f32 %v650, %v626
        %v652 = vadd.f32 %v651, %v630
        %v653 = vadd.f32 %v652, %v634
        %v654 = vadd.f32 %v653, %v638
        %v655 = vadd.f32 %v654, %v642
        %v656 = vadd.f32 %v655, %v646
        %v657 = vrot.slane %v656, 4
        %v658 = vadd.f32 %v656, %v657
        %v659 = vrot.slane %v658, 2
        %v660 = vadd.f32 %v658, %v659
        %v661 = vrot.slane %v660, 1
        %v662 = vadd.f32 %v660, %v661
        %v663 = vadd.f32 %v619, %v623
        %v664 = vadd.f32 %v663, %v627
        %v665 = vadd.f32 %v664, %v631
        %v666 = vadd.f32 %v665, %v635
        %v667 = vadd.f32 %v666, %v639
        %v668 = vadd.f32 %v667, %v643
        %v669 = vadd.f32 %v668, %v647
        %v670 = vrot.slane %v669, 4
        %v671 = vadd.f32 %v669, %v670
        %v672 = vrot.slane %v671, 2
        %v673 = vadd.f32 %v671, %v672
        %v674 = vrot.slane %v673, 1
        %v675 = vadd.f32 %v673, %v674
        %v676 = vadd.f32 %v620, %v624
        %v677 = vadd.f32 %v676, %v628
        %v678 = vadd.f32 %v677, %v632
        %v679 = vadd.f32 %v678, %v636
        %v680 = vadd.f32 %v679, %v640
        %v681 = vadd.f32 %v680, %v644
        %v682 = vadd.f32 %v681, %v648
        %v683 = vrot.slane %v682, 4
        %v684 = vadd.f32 %v682, %v683
        %v685 = vrot.slane %v684, 2
        %v686 = vadd.f32 %v684, %v685
        %v687 = vrot.slane %v686, 1
        %v688 = vadd.f32 %v686, %v687
        %v689 = vadd.f32 %v621, %v625
        %v690 = vadd.f32 %v689, %v629
        %v691 = vadd.f32 %v690, %v633
        %v692 = vadd.f32 %v691, %v637
        %v693 = vadd.f32 %v692, %v641
        %v694 = vadd.f32 %v693, %v645
        %v695 = vadd.f32 %v694, %v649
        %v696 = vrot.slane %v695, 4
        %v697 = vadd.f32 %v695, %v696
        %v698 = vrot.slane %v697, 2
        %v699 = vadd.f32 %v697, %v698
        %v700 = vrot.slane %v699, 1
        %v701 = vadd.f32 %v699, %v700
        %s702 = sld [smem:[#allocation2]]
        %v703 = vstv %s702
        %v704 = vadd.f32 %v662, %v703
        %v705 = vadd.f32 %v675, %v703
        %v706 = vadd.f32 %v688, %v703
        %v707 = vadd.f32 %v701, %v703
        %v712 = vcombine.low %v704, %v705
        %v713 = vcombine.low %v706, %v707
        %v715 = vunpack.c.l.s4 1966171168
        %v716 = vunpack.c.0.s8 %v715
        %v717 = vlaneseq
        %v718 = vshrl.u32 %v717, 7
        %v719 = vsub.s32 %v716, %v718
        %v720 = vrot.slane %v712, %v719
        %v722 = vunpack.c.l.s4 1966171168
        %v723 = vunpack.c.0.s8 %v722
        %v724 = vlaneseq
        %v725 = vshrl.u32 %v724, 7
        %v726 = vsub.s32 %v723, %v725
        %v727 = vrot.slane %v713, %v726
        %v728 = vcombine.low %v720, %v727
        %v730 = vunpack.c.l.s4 1966171168
        %v731 = vunpack.c.0.s8 %v730
        %v732 = vlaneseq
        %v733 = vshrl.u32 %v732, 7
        %v734 = vsub.s32 %v731, %v733
        %v735 = vrot.slane %v728, %v734
        %v737 = vlaneseq
        %vm738 = vcmp.ge.s32.totalorder %v737, 0
        %vm739 = vcmp.lt.s32.totalorder %v737, 512
        %vm740 = vmand %vm738, %vm739
        %741 = vst.msk [vmem:[%s219] sm:$0xf] %vm740, %v735
        %s742 = sand.u32 %s138, 1
        %s743 = scalar_lea.sflag [#allocation4], %s742
        %s744 = sand.u32 %s138, 1
        %s745 = smul.addr %s744, 4
        %s746 = scalar_lea.vmem [#allocation3], %s745
        // Predicated region
        $region41: #{tpu_custom_call.1} parent=39 // pred_check
          %p747 = pneg %p148
        $region42: #{tpu_custom_call.1} parent=39 // pred_check_branch
          %749 = sbr.rel (%p747) target = $region44
        $region43: #{tpu_custom_call.1} parent=39 // pred_region
          %s750 = smul.u32 4, %s20
          %s752 = ssub.s32 64, 64
          %753 = vsyncadd %s743, %s752
          %s754 = smul.addr %s750, 16
          %s755 = scalar_lea.hbm %s5, %s754
          %s757 = sshll.u32 %s746, 4
          %s758 = int_to_ptr.vmem [resolvable:$true] %s757
          %760 = dma.vmem_to_hbm [thread:$0]  %s758, 64, %s755, %s743
        $region44: #{tpu_custom_call.1} parent=39 // pred_fallthru
          _
      $region40: #{tpu_custom_call.1} parent=5 // pred_fallthru
        _
      %p761 = scmp.le.s32.totalorder 2, %s15
      // Predicated region
      $region45: #{tpu_custom_call.1} parent=5 // pred_check
        %p762 = pneg %p761
      $region46: #{tpu_custom_call.1} parent=5 // pred_check_branch
        %764 = sbr.rel (%p762) target = $region48
      $region47: #{tpu_custom_call.1} parent=5 // pred_region
        %s765 = ssub.s32 %s15, 2
        // Predicated region
        $region49: #{tpu_custom_call.1} parent=47 // pred_check
          %p766 = pneg %p154
        $region50: #{tpu_custom_call.1} parent=47 // pred_check_branch
          %768 = sbr.rel (%p766) target = $region52
        $region51: #{tpu_custom_call.1} parent=47 // pred_region
          %s769 = sand.u32 %s139, 1
          %s770 = scalar_lea.sflag [#allocation4], %s769
          %s771 = sand.u32 %s139, 1
          %s772 = smul.addr %s771, 4
          %s773 = scalar_lea.vmem [#allocation3], %s772
          %774 = dma.done %s770, 64
        $region52: #{tpu_custom_call.1} parent=47 // pred_fallthru
          _
      $region48: #{tpu_custom_call.1} parent=5 // pred_fallthru
        _
    $region6: #{tpu_custom_call.1} parent=1 // loop_footer
      %s19 = sadd.s32 1, %s15
    $region7: #{tpu_custom_call.1} parent=1 // loop_footer_branch
      %14 = sbr.rel target = $region3
    $region8: #{tpu_custom_call.1} parent=1 // loop_exit
      _
    %775 = vsyncpa [#allocation4], 1
    %s776 = scalar_lea.sflag [#allocation4], 1
    %777 = vsyncpa %s776, 1

</llo_original>
